<compile_context>
chip_gen: v7x
topology: tpu7x:2x2x1
jax: 0.10.0
libtpu: 0.0.40
codegen_flags: <defaults>
</compile_context>

<pallas_src>
import jax
import jax.numpy as jnp
from jax.experimental import pallas as pl
from jax.experimental.pallas import tpu as pltpu


# ---------------------------------------------------------------------------
# Kernel
# ---------------------------------------------------------------------------
def _dense_conv_kernel(x_ref, w_ref, b_ref, o_ref):
    # x_ref: (1, Cin, THW)   -- Cin on sublanes, spatial on lanes (lane-dense)
    # w_ref: (NF, Cin)       -- full 1x1 conv weight
    # b_ref: (NF, 1)         -- bias (f32), broadcast over lanes
    # o_ref: (1, Cin+NF, THW)
    x = x_ref[0]                                                       # (Cin, THW)
    acc = jnp.dot(w_ref[...], x, preferred_element_type=jnp.float32)  # MXU: (NF, THW)
    feat = jnp.maximum(acc + b_ref[...], 0.0)                          # bias + ReLU (VPU, f32)
    # Fused channel concat done once in vregs, then a single lane-dense store.
    # Avoids the sublane-misaligned split stores (masked vst) when Cin % 8 != 0.
    o_ref[0] = jnp.concatenate(
        [x.astype(o_ref.dtype), feat.astype(o_ref.dtype)], axis=0
    )


# ---------------------------------------------------------------------------
# Tiling helpers
# ---------------------------------------------------------------------------
_FALLBACK_VMEM_CAPACITY = 64 << 20  # assume the smallest generation (v7x) if query fails


def _vmem_capacity_bytes():
    try:
        cap = getattr(pltpu.get_tpu_info(), "vmem_capacity_bytes", None)
        if cap:
            return int(cap)
    except Exception:  # pragma: no cover - defensive: query unsupported on some backends
        pass
    return _FALLBACK_VMEM_CAPACITY


def _pick_spatial_tile(hw, per_col_bytes, vmem_budget, min_grid_steps, n_batch):
    """Largest lane-dense (128-multiple) spatial tile under the VMEM budget."""
    budget_cols = vmem_budget // max(per_col_bytes, 1)
    thw = max(128, (budget_cols // 128) * 128)

    if hw <= thw:
        thw = hw  # whole spatial plane as one block (full-dim block is always legal)
    elif hw % 128 == 0:
        # Prefer an exact 128-multiple divisor (no masked tail) if one is nearby;
        # otherwise keep the budget tile and let the cdiv grid mask the tail block.
        t = thw
        lo = max(128, thw // 2)
        while t >= lo and hw % t != 0:
            t -= 128
        if t >= lo and hw % t == 0:
            thw = t

    # Guarantee at least `min_grid_steps` parallel steps (v7x has 2 TensorCores).
    def n_steps(t):
        return n_batch * ((hw + t - 1) // t)

    while n_steps(thw) < min_grid_steps and thw > 128:
        halved = max(128, ((thw // 2 + 127) // 128) * 128)
        if halved >= thw:
            break
        thw = halved
    return thw


# ---------------------------------------------------------------------------
# Wrapper
# ---------------------------------------------------------------------------
def dense_conv_forward(x_nchw, w_oi, b, *, io_dtype=None, vmem_budget_bytes=None):
    """DenseConv forward: out = concat([x, relu(conv1x1(x))], channel dim).

    x_nchw: (N, Cin, H, W)
    w_oi:   (NF, Cin) or (NF, Cin, 1, 1)  -- 1x1 conv weight
    b:      (NF,)
    io_dtype: optional activation I/O dtype (e.g. jnp.bfloat16) for ~2x HBM savings
              on v6e/v7x; default keeps the input dtype (f32 == PyTorch numerics).
    returns (N, Cin + NF, H, W)
    """
    N, Cin, H, W = x_nchw.shape
    w = w_oi.reshape(w_oi.shape[0], -1)
    NF, wc = w.shape
    assert wc == Cin, "weight/input channel mismatch"
    HW = H * W
    out_c = Cin + NF

    out_dtype = x_nchw.dtype if io_dtype is None else io_dtype
    x3 = x_nchw.astype(out_dtype).reshape(N, Cin, HW)  # free reshape, no transpose
    w2 = w.astype(out_dtype)                           # tiny; bf16 path -> bf16 MXU operands
    b2 = b.reshape(NF, 1).astype(jnp.float32)          # bias added to the f32 accumulator

    itemsize = jnp.dtype(out_dtype).itemsize
    cap = _vmem_capacity_bytes()
    if vmem_budget_bytes is None:
        # ~24 MiB on v5e/v6e (128 MiB VMEM), ~16 MiB on v7x (64 MiB VMEM).
        vmem_budget_bytes = min(24 << 20, cap // 4)

    # Per spatial column: double-buffered x tile + double-buffered output tile.
    per_col_bytes = 2 * itemsize * (Cin + out_c)
    thw = _pick_spatial_tile(HW, per_col_bytes, vmem_budget_bytes,
                             min_grid_steps=2, n_batch=N)
    n_spatial = -(-HW // thw)
    grid = (N, n_spatial)

    # Actual per-step footprint + headroom; keeps v5e's 16 MiB scoped default from
    # capping the tile and stays well under v7x's 64 MiB physical VMEM.
    footprint = per_col_bytes * thw + 2 * itemsize * NF * Cin + 2 * 4 * NF
    vmem_limit = int(min(cap * 7 // 8, footprint + (8 << 20)))

    out3 = pl.pallas_call(
        _dense_conv_kernel,
        out_shape=jax.ShapeDtypeStruct((N, out_c, HW), out_dtype),
        grid_spec=pltpu.PrefetchScalarGridSpec(
            num_scalar_prefetch=0,
            grid=grid,
            in_specs=[
                pl.BlockSpec((1, Cin, thw), lambda n, j: (n, 0, j)),  # x tile
                pl.BlockSpec((NF, Cin), lambda n, j: (0, 0)),         # full weight (cached)
                pl.BlockSpec((NF, 1), lambda n, j: (0, 0)),           # full bias (cached)
            ],
            out_specs=pl.BlockSpec((1, out_c, thw), lambda n, j: (n, 0, j)),
        ),
        compiler_params=pltpu.CompilerParams(
            dimension_semantics=("parallel", "parallel"),
            vmem_limit_bytes=vmem_limit,
        ),
    )(x3, w2, b2)

    return out3.reshape(N, out_c, H, W)


# ---------------------------------------------------------------------------
# Self-test
# ---------------------------------------------------------------------------
if __name__ == "__main__":
    key = jax.random.PRNGKey(0)
    k_x, k_w = jax.random.split(key)

    # Small shapes consistent with the module: batch=2, in_nf=4, 16x16 spatial, nf=64.
    N, Cin, H, W = 2, 4, 16, 16
    NF = 64

    x = jax.random.normal(k_x, (N, Cin, H, W), dtype=jnp.float32)

    # Kaiming-normal init (fan_in = Cin * 1 * 1), bias = 0 — matches module __init__.
    std = (2.0 / Cin) ** 0.5
    w = std * jax.random.normal(k_w, (NF, Cin), dtype=jnp.float32)
    b = jnp.zeros((NF,), dtype=jnp.float32)

    out = jax.jit(dense_conv_forward)(x, w, b)
    out = jax.block_until_ready(out)

    # Plain-JAX reference: 1x1 conv + ReLU, then concat([x, feat], channel dim).
    ref_feat = jnp.maximum(
        jnp.einsum("nchw,oc->nohw", x, w) + b[None, :, None, None], 0.0
    )
    ref = jnp.concatenate([x, ref_feat], axis=1)
    assert out.shape == (N, Cin + NF, H, W)
    assert jnp.allclose(out, ref, atol=1e-5, rtol=1e-5)

    print("KERNEL_OK")
</pallas_src>

<mosaic_0001>
module attributes {stable_mosaic.version = 11 : i64} {
  func.func @_dense_conv_kernel(%arg0: i32, %arg1: i32, %arg2: memref<1x4x256xf32, #tpu.memory_space<vmem>>, %arg3: memref<64x4xf32, #tpu.memory_space<vmem>>, %arg4: memref<64x1xf32, #tpu.memory_space<vmem>>, %arg5: memref<1x68x256xf32, #tpu.memory_space<vmem>>) attributes {dimension_semantics = [#tpu.dimension_semantics<parallel>, #tpu.dimension_semantics<parallel>], iteration_bounds = array<i64: 2, 1>, scalar_prefetch = 0 : i64, scratch_operands = 0 : i64, tpu.core_type = #tpu.core_type<tc>, window_params = [{transform_indices = @transform_0, window_bounds = array<i64: 1, 4, 256>}, {pipeline_mode = #tpu.pipeline_mode<synchronous>, transform_indices = @transform_1, window_bounds = array<i64: 64, 4>}, {pipeline_mode = #tpu.pipeline_mode<synchronous>, transform_indices = @transform_2, window_bounds = array<i64: 64, 1>}, {transform_indices = @transform_3, window_bounds = array<i64: 1, 68, 256>}]} {
    %c0 = arith.constant 0 : index
    %c0_0 = arith.constant 0 : index
    %c0_1 = arith.constant 0 : index
    %0 = vector.load %arg2[%c0, %c0_0, %c0_1] : memref<1x4x256xf32, #tpu.memory_space<vmem>>, vector<1x4x256xf32>
    %1 = vector.shape_cast %0 : vector<1x4x256xf32> to vector<4x256xf32>
    %c0_2 = arith.constant 0 : index
    %c0_3 = arith.constant 0 : index
    %2 = vector.load %arg3[%c0_2, %c0_3] : memref<64x4xf32, #tpu.memory_space<vmem>>, vector<64x4xf32>
    %cst = arith.constant dense<0.000000e+00> : vector<64x256xf32>
    %3 = tpu.matmul %2, %1, %cst {dimension_numbers = #tpu.dot_dimension_numbers<[1], [0], [0], [1], [0, 0, 1, 1], [], []>} : vector<64x4xf32>, vector<4x256xf32>, vector<64x256xf32> -> vector<64x256xf32>
    %c0_4 = arith.constant 0 : index
    %c0_5 = arith.constant 0 : index
    %4 = vector.load %arg4[%c0_4, %c0_5] : memref<64x1xf32, #tpu.memory_space<vmem>>, vector<64x1xf32>
    %5 = vector.broadcast %4 : vector<64x1xf32> to vector<64x256xf32>
    %6 = arith.addf %3, %5 : vector<64x256xf32>
    %cst_6 = arith.constant 0.000000e+00 : f32
    %7 = vector.broadcast %cst_6 : f32 to vector<64x256xf32>
    %8 = arith.maximumf %6, %7 : vector<64x256xf32>
    %9 = tpu.concatenate %1, %8 in 0 : vector<4x256xf32>, vector<64x256xf32> -> vector<68x256xf32>
    %c0_7 = arith.constant 0 : index
    %c0_8 = arith.constant 0 : index
    %c0_9 = arith.constant 0 : index
    %10 = vector.load %arg5[%c0_7, %c0_8, %c0_9] : memref<1x68x256xf32, #tpu.memory_space<vmem>>, vector<1x68x256xf32>
    %11 = vector.shape_cast %10 : vector<1x68x256xf32> to vector<68x256xf32>
    %12 = vector.shape_cast %9 : vector<68x256xf32> to vector<1x68x256xf32>
    tpu.vector_store %arg5[%c0_7, %c0_8, %c0_9], %12 {strides = array<i32>} : memref<1x68x256xf32, #tpu.memory_space<vmem>>, vector<1x68x256xf32>,
    return
  }
  func.func @transform_0(%arg0: i32, %arg1: i32) -> (i32, i32, i32) {
    %c0_i32 = arith.constant 0 : i32
    %c0_i32_0 = arith.constant 0 : i32
    return %arg0, %c0_i32, %arg1 : i32, i32, i32
  }
  func.func @transform_1(%arg0: i32, %arg1: i32) -> (i32, i32) {
    %c0_i32 = arith.constant 0 : i32
    %c0_i32_0 = arith.constant 0 : i32
    %c0_i32_1 = arith.constant 0 : i32
    return %c0_i32, %c0_i32_0 : i32, i32
  }
  func.func @transform_2(%arg0: i32, %arg1: i32) -> (i32, i32) {
    %c0_i32 = arith.constant 0 : i32
    %c0_i32_0 = arith.constant 0 : i32
    %c0_i32_1 = arith.constant 0 : i32
    return %c0_i32, %c0_i32_0 : i32, i32
  }
  func.func @transform_3(%arg0: i32, %arg1: i32) -> (i32, i32, i32) {
    %c0_i32 = arith.constant 0 : i32
    %c0_i32_0 = arith.constant 0 : i32
    return %arg0, %c0_i32, %arg1 : i32, i32, i32
  }
}

</mosaic_0001>

<llo_original>
// kernel: dense_conv_forward.1
$region0: #{dense_conv_forward.1}
  #allocation0 [shape = 'u32[]', space=smem, size = 0x4, offset = 0x4, fixed_abs, tag = 'smem constant byte address 0x4 - core index']
  #allocation1 [shape = 'u32[144,128]{1,0:T(1,128)}', space=vmem, size = 0x12000, scoped, tag = 'internal scratch']
  %s0 = inlined_call_operand.vmem [shape: f32[2,4,256], index: 0, kind: input, shape index: {}]
  %s1 = inlined_call_operand.vmem [shape: f32[64,4], index: 1, kind: input, shape index: {}]
  %s2 = inlined_call_operand.vmem [shape: f32[64,1], index: 2, kind: input, shape index: {}]
  %s3 = inlined_call_operand.vmem [shape: f32[2,68,256], index: 3, kind: output, shape index: {}]
  %s4 = sld [smem:[#allocation0]]
  $region45: #{dense_conv_forward.1} parent=0
    _
  %s6 = ssub.s32 1, %s4
  %s7 = scalar_select 0, %s6, %s4
  loop: start=0, step=1, limit=4
  $region2: #{dense_conv_forward.1} parent=0 // loop_pre_header
    _
  $region3: #{dense_conv_forward.1} parent=0 // loop_header
    %s9 = sphi 0, %s13
    %p10 = scmp.ge.s32.totalorder %s9, 4
    %s16 = sphi 0, %s28
    %s17 = sphi 0, %s24
    %s18 = sphi 0, %s16
    %s19 = sphi 0, %s17
    %s20 = sphi 0, %s18
    %s21 = sphi 0, %s19
    %s33 = sphi 0, %s35
    %s36 = sphi 0, %s33
    %s37 = sphi 0, %s36
    %s53 = sphi 0, %s37
    %s57 = sphi 0, %s57
    %s59 = sphi 0, %s57
    %s60 = sphi 0, %s59
    %s74 = sphi 0, %s60
    %s78 = sphi 0, %s78
    %s80 = sphi 0, %s78
    %s81 = sphi 0, %s80
    %s95 = sphi 0, %s81
    %s103 = sphi 0, %s105
    %s106 = sphi 0, %s103
    %s107 = sphi 0, %s106
    %s123 = sphi 0, %s107
  $region4: #{dense_conv_forward.1} parent=0 // loop_header_branch
    %12 = sbr.rel (%p10) target = $region8
  $region5: #{dense_conv_forward.1} parent=0 // loop_body
    %s14 = ssub.s32 %s9, 1
    %s15 = ssub.s32 %s9, 2
    %s22 = sadd.s32 1, %s17
    %p23 = scmp.ge.s32.totalorder %s22, 1
    %s24 = scalar_select %p23, 0, %s22
    %s25 = sadd.s32 1, %s16
    %s26 = scalar_select %p23, %s25, %s16
    %p27 = scmp.ge.s32.totalorder %s26, 2
    %s28 = scalar_select %p27, 0, %s26
    %s29 = ssub.s32 %s16, %s28
    %s30 = ssub.s32 %s17, %s24
    %s31 = sor.u32 %s29, %s30
    %p32 = scmp.eq.s32.totalorder %s31, 0
    %s34 = sadd.s32 %s33, 1
    %s35 = scalar_select %p32, %s33, %s34
    %p38 = pneg %p32
    %p39 = scmp.eq.s32.totalorder %s9, 1
    %p40 = por %p38, %p39
    %p41 = scmp.ne.s32.totalorder %s33, %s36
    %p42 = scmp.eq.s32.totalorder %s9, 0
    %p43 = por %p41, %p42
    %p44 = scmp.ne.s32.totalorder %s33, %s36
    %p45 = scmp.eq.s32.totalorder %s14, 1
    %p46 = por %p44, %p45
    %p47 = scmp.ne.s32.totalorder %s36, %s37
    %p48 = scmp.eq.s32.totalorder %s14, 0
    %p49 = por %p47, %p48
    %p50 = scmp.ne.s32.totalorder %s36, %s37
    %p51 = scmp.eq.s32.totalorder %s15, 1
    %p52 = por %p50, %p51
    %p54 = scmp.ne.s32.totalorder %s37, %s53
    %p55 = scmp.eq.s32.totalorder %s15, 0
    %p56 = por %p54, %p55
    %s58 = sadd.s32 %s57, 1
    %p61 = scmp.eq.s32.totalorder %s9, 1
    %p62 = scmp.ne.s32.totalorder %s57, %s59
    %p63 = scmp.eq.s32.totalorder %s9, 0
    %p64 = por %p62, %p63
    %p65 = scmp.ne.s32.totalorder %s57, %s59
    %p66 = scmp.eq.s32.totalorder %s14, 1
    %p67 = por %p65, %p66
    %p68 = scmp.ne.s32.totalorder %s59, %s60
    %p69 = scmp.eq.s32.totalorder %s14, 0
    %p70 = por %p68, %p69
    %p71 = scmp.ne.s32.totalorder %s59, %s60
    %p72 = scmp.eq.s32.totalorder %s15, 1
    %p73 = por %p71, %p72
    %p75 = scmp.ne.s32.totalorder %s60, %s74
    %p76 = scmp.eq.s32.totalorder %s15, 0
    %p77 = por %p75, %p76
    %s79 = sadd.s32 %s78, 1
    %p82 = scmp.eq.s32.totalorder %s9, 1
    %p83 = scmp.ne.s32.totalorder %s78, %s80
    %p84 = scmp.eq.s32.totalorder %s9, 0
    %p85 = por %p83, %p84
    %p86 = scmp.ne.s32.totalorder %s78, %s80
    %p87 = scmp.eq.s32.totalorder %s14, 1
    %p88 = por %p86, %p87
    %p89 = scmp.ne.s32.totalorder %s80, %s81
    %p90 = scmp.eq.s32.totalorder %s14, 0
    %p91 = por %p89, %p90
    %p92 = scmp.ne.s32.totalorder %s80, %s81
    %p93 = scmp.eq.s32.totalorder %s15, 1
    %p94 = por %p92, %p93
    %p96 = scmp.ne.s32.totalorder %s81, %s95
    %p97 = scmp.eq.s32.totalorder %s15, 0
    %p98 = por %p96, %p97
    %s99 = ssub.s32 %s16, %s28
    %s100 = ssub.s32 %s17, %s24
    %s101 = sor.u32 %s99, %s100
    %p102 = scmp.eq.s32.totalorder %s101, 0
    %s104 = sadd.s32 %s103, 1
    %s105 = scalar_select %p102, %s103, %s104
    %p108 = pneg %p102
    %p109 = scmp.eq.s32.totalorder %s9, 1
    %p110 = por %p108, %p109
    %p111 = scmp.ne.s32.totalorder %s103, %s106
    %p112 = scmp.eq.s32.totalorder %s9, 0
    %p113 = por %p111, %p112
    %p114 = scmp.ne.s32.totalorder %s103, %s106
    %p115 = scmp.eq.s32.totalorder %s14, 1
    %p116 = por %p114, %p115
    %p117 = scmp.ne.s32.totalorder %s106, %s107
    %p118 = scmp.eq.s32.totalorder %s14, 0
    %p119 = por %p117, %p118
    %p120 = scmp.ne.s32.totalorder %s106, %s107
    %p121 = scmp.eq.s32.totalorder %s15, 1
    %p122 = por %p120, %p121
    %p124 = scmp.ne.s32.totalorder %s107, %s123
    %p125 = scmp.eq.s32.totalorder %s15, 0
    %p126 = por %p124, %p125
    %p127 = scmp.le.s32.totalorder 1, %s9
    %p128 = scmp.lt.s32.totalorder %s9, 3
    %p129 = pnand %p127, %p128
    %p130 = pneg %p129
    // Predicated region
    $region9: #{dense_conv_forward.1} parent=5 // pred_check
      _
    $region10: #{dense_conv_forward.1} parent=5 // pred_check_branch
      %132 = sbr.rel (%p129) target = $region12
    $region11: #{dense_conv_forward.1} parent=5 // pred_region
      %s133 = ssub.s32 %s9, 1
      // Predicated region
      $region13: #{dense_conv_forward.1} parent=11 // pred_check
        %p134 = pneg %p70
      $region14: #{dense_conv_forward.1} parent=11 // pred_check_branch
        %136 = sbr.rel (%p134) target = $region16
      $region15: #{dense_conv_forward.1} parent=11 // pred_region
        _
      $region16: #{dense_conv_forward.1} parent=11 // pred_fallthru
        _
      // Predicated region
      $region17: #{dense_conv_forward.1} parent=11 // pred_check
        %p137 = pneg %p91
      $region18: #{dense_conv_forward.1} parent=11 // pred_check_branch
        %139 = sbr.rel (%p137) target = $region20
      $region19: #{dense_conv_forward.1} parent=11 // pred_region
        _
      $region20: #{dense_conv_forward.1} parent=11 // pred_fallthru
        _
    $region12: #{dense_conv_forward.1} parent=5 // pred_fallthru
      _
    %p140 = scmp.lt.s32.totalorder %s9, 2
    // Predicated region
    $region21: #{dense_conv_forward.1} parent=5 // pred_check
      %p141 = pneg %p140
    $region22: #{dense_conv_forward.1} parent=5 // pred_check_branch
      %143 = sbr.rel (%p141) target = $region24
    $region23: #{dense_conv_forward.1} parent=5 // pred_region
      // Predicated region
      $region25: #{dense_conv_forward.1} parent=23 // pred_check
        %p144 = pneg %p43
      $region26: #{dense_conv_forward.1} parent=23 // pred_check_branch
        %146 = sbr.rel (%p144) target = $region28
      $region27: #{dense_conv_forward.1} parent=23 // pred_region
        %s147 = smul.u32 2, %s17
        %p148 = scmp.lt.s32.totalorder %s16, 1
        %s149 = scalar_select %p148, %s16, 1
        %p150 = scmp.lt.s32.totalorder %s147, 1
        %s151 = scalar_select %p150, %s147, 1
        %s152 = smul.addr %s149, 2
        %s153 = sadd.s32 %s151, %s152
        %s154 = smul.addr %s153, 4
        %s155 = scalar_lea.vmem %s0, %s154
        %s156 = smul.u32 2, %s17
      $region28: #{dense_conv_forward.1} parent=23 // pred_fallthru
        _
    $region24: #{dense_conv_forward.1} parent=5 // pred_fallthru
      _
    %p157 = scmp.le.s32.totalorder 1, %s9
    %p158 = scmp.lt.s32.totalorder %s9, 3
    %p159 = pnand %p157, %p158
    %p160 = pneg %p159
    // Predicated region
    $region29: #{dense_conv_forward.1} parent=5 // pred_check
      _
    $region30: #{dense_conv_forward.1} parent=5 // pred_check_branch
      %162 = sbr.rel (%p159) target = $region32
    $region31: #{dense_conv_forward.1} parent=5 // pred_region
      %s163 = ssub.s32 %s9, 1
      %s164 = smul.u32 2, %s19
      %p165 = scmp.lt.s32.totalorder %s18, 1
      %s166 = scalar_select %p165, %s18, 1
      %p167 = scmp.lt.s32.totalorder %s164, 1
      %s168 = scalar_select %p167, %s164, 1
      %s169 = smul.addr %s166, 2
      %s170 = sadd.s32 %s168, %s169
      %s171 = smul.addr %s170, 4
      %s172 = scalar_lea.vmem %s0, %s171
      %p173 = pneg %p49
      %p174 = pneg %p46
      %p175 = pneg %p70
      %p176 = pneg %p67
      %p177 = pneg %p91
      %p178 = pneg %p88
      %p179 = pneg %p119
      %p180 = pneg %p116
      %s181 = smul.u32 2, %s19
      %p182 = scmp.lt.s32.totalorder %s18, 1
      %s183 = scalar_select %p182, %s18, 1
      %p184 = scmp.lt.s32.totalorder %s181, 1
      %s185 = scalar_select %p184, %s181, 1
      %s186 = smul.addr %s183, 18
      %s187 = sadd.s32 %s185, %s186
      %s188 = smul.addr %s187, 8
      %s189 = scalar_lea.vmem %s3, %s188
      %s190 = smul.u32 2, %s19
      %p191 = scmp.lt.s32.totalorder %s18, 1
      %s192 = scalar_select %p191, %s18, 1
      %p193 = scmp.lt.s32.totalorder %s190, 1
      %s194 = scalar_select %p193, %s190, 1
      %s195 = smul.addr %s192, 2
      %s196 = sadd.s32 %s194, %s195
      %s197 = smul.addr %s196, 4
      %s198 = scalar_lea.vmem %s0, %s197
      %s199 = smul.u32 2, %s19
      %s200 = smul.u32 2, %s19
      %p201 = scmp.lt.s32.totalorder %s18, 1
      %s202 = scalar_select %p201, %s18, 1
      %p203 = scmp.lt.s32.totalorder %s200, 1
      %s204 = scalar_select %p203, %s200, 1
      %s205 = smul.addr %s202, 18
      %s206 = sadd.s32 %s204, %s205
      %s207 = smul.addr %s206, 8
      %s208 = scalar_lea.vmem %s3, %s207
      %s209 = smul.u32 2, %s19
      %v210 = vld [vmem:[%s198] sm:$0xff]
      %v211 = vld [vmem:[%s1] sm:$0xff]
      %v212 = vld [vmem:[%s1 + $0x8] sm:$0xff]
      %v213 = vld [vmem:[%s1 + $0x10] sm:$0xff]
      %v214 = vld [vmem:[%s1 + $0x18] sm:$0xff]
      %v215 = vld [vmem:[%s1 + $0x20] sm:$0xff]
      %v216 = vld [vmem:[%s1 + $0x28] sm:$0xff]
      %v217 = vld [vmem:[%s1 + $0x30] sm:$0xff]
      %v218 = vld [vmem:[%s1 + $0x38] sm:$0xff]
      %v219 = vld [vmem:[%s2] sm:$0xff]
      %v220 = vld [vmem:[%s2 + $0x8] sm:$0xff]
      %v221 = vld [vmem:[%s2 + $0x10] sm:$0xff]
      %v222 = vld [vmem:[%s2 + $0x18] sm:$0xff]
      %v223 = vld [vmem:[%s2 + $0x20] sm:$0xff]
      %v224 = vld [vmem:[%s2 + $0x28] sm:$0xff]
      %v225 = vld [vmem:[%s2 + $0x30] sm:$0xff]
      %v226 = vld [vmem:[%s2 + $0x38] sm:$0xff]
      %228 = vset.pattern.permute.xlu0 0
      %229 = vperm.xlu0 %228, %v219
      %v230 = vpop.permute.xlu0 %229
      %233 = vset.pattern.permute.xlu0 0
      %234 = vperm.xlu0 %233, %v220
      %v235 = vpop.permute.xlu0 %234
      %238 = vset.pattern.permute.xlu0 0
      %239 = vperm.xlu0 %238, %v221
      %v240 = vpop.permute.xlu0 %239
      %243 = vset.pattern.permute.xlu0 0
      %244 = vperm.xlu0 %243, %v222
      %v245 = vpop.permute.xlu0 %244
      %248 = vset.pattern.permute.xlu0 0
      %249 = vperm.xlu0 %248, %v223
      %v250 = vpop.permute.xlu0 %249
      %253 = vset.pattern.permute.xlu0 0
      %254 = vperm.xlu0 %253, %v224
      %v255 = vpop.permute.xlu0 %254
      %258 = vset.pattern.permute.xlu0 0
      %259 = vperm.xlu0 %258, %v225
      %v260 = vpop.permute.xlu0 %259
      %263 = vset.pattern.permute.xlu0 0
      %264 = vperm.xlu0 %263, %v226
      %v265 = vpop.permute.xlu0 %264
      %v268 = vcombine.high %v210, %v210
      %vm269 = vcmask 31744
      %v271 = vsel %vm269, %v211, 0
      %v274 = vsel %vm269, %v212, 0
      %v277 = vsel %vm269, %v213, 0
      %v280 = vsel %vm269, %v214, 0
      %v283 = vsel %vm269, %v215, 0
      %v286 = vsel %vm269, %v216, 0
      %v289 = vsel %vm269, %v217, 0
      %v292 = vsel %vm269, %v218, 0
      %vm294 = vcmask 1043456
      %v295 = vsel %vm294, %v210, 0
      %v297 = vsel %vm294, %v268, 0
      %299 = vmatprep.subr.mxu0 %v297
      %300 = vmatpush1.msra.mxu0 %v295
      %301 = vmatprep.subr.mxu0 0.0
      %302 = vmatpush1.msra.mxu0 0.0
      %303 = vmatprep.subr.mxu0 0.0
      %304 = vmatpush1.msra.mxu0 0.0
      %305 = vmatprep.subr.mxu0 0.0
      %306 = vmatpush1.msra.mxu0 0.0
      %307 = vmatprep.subr.mxu0 0.0
      %308 = vmatpush1.msra.mxu0 0.0
      %309 = vmatprep.subr.mxu0 0.0
      %310 = vmatpush1.msra.mxu0 0.0
      %311 = vmatprep.subr.mxu0 0.0
      %312 = vmatpush1.msra.mxu0 0.0
      %313 = vmatprep.subr.mxu0 0.0
      %314 = vmatpush1.msra.mxu0 0.0
      %315 = vmatprep.subr.mxu0 0.0
      %316 = vmatpush1.msra.mxu0 0.0
      %317 = vmatprep.subr.mxu0 0.0
      %318 = vmatpush1.msra.mxu0 0.0
      %319 = vmatprep.subr.mxu0 0.0
      %320 = vmatpush1.msra.mxu0 0.0
      %321 = vmatprep.subr.mxu0 0.0
      %322 = vmatpush1.msra.mxu0 0.0
      %323 = vmatprep.subr.mxu0 0.0
      %324 = vmatpush1.msra.mxu0 0.0
      %325 = vmatprep.subr.mxu0 0.0
      %326 = vmatpush1.msra.mxu0 0.0
      %327 = vmatprep.subr.mxu0 0.0
      %328 = vmatpush1.msra.mxu0 0.0
      %329 = vmatprep.subr.mxu0 0.0
      %330 = vmatpush1.msra.mxu0 0.0
      %331 = vmatprep.subr.mxu0 0.0
      %332 = vmatpush1.msra.mxu0 0.0
      %333 = vmatprep.subr.mxu0 0.0
      %334 = vmatpush1.msra.mxu0 0.0
      %335 = vmatprep.subr.mxu0 0.0
      %336 = vmatpush1.msra.mxu0 0.0
      %337 = vmatprep.subr.mxu0 0.0
      %338 = vmatpush1.msra.mxu0 0.0
      %339 = vmatprep.subr.mxu0 0.0
      %340 = vmatpush1.msra.mxu0 0.0
      %341 = vmatprep.subr.mxu0 0.0
      %342 = vmatpush1.msra.mxu0 0.0
      %343 = vmatprep.subr.mxu0 0.0
      %344 = vmatpush1.msra.mxu0 0.0
      %345 = vmatprep.subr.mxu0 0.0
      %346 = vmatpush1.msra.mxu0 0.0
      %347 = vmatprep.subr.mxu0 0.0
      %348 = vmatpush1.msra.mxu0 0.0
      %349 = vmatprep.subr.mxu0 0.0
      %350 = vmatpush1.msra.mxu0 0.0
      %351 = vmatprep.subr.mxu0 0.0
      %352 = vmatpush1.msra.mxu0 0.0
      %353 = vmatprep.subr.mxu0 0.0
      %354 = vmatpush1.msra.mxu0 0.0
      %355 = vmatprep.subr.mxu0 0.0
      %356 = vmatpush1.msra.mxu0 0.0
      %357 = vmatprep.subr.mxu0 0.0
      %358 = vmatpush1.msra.mxu0 0.0
      %359 = vmatprep.subr.mxu0 0.0
      %360 = vmatpush1.msra.mxu0 0.0
      %361 = vmatprep.subr.mxu0 0.0
      %362 = vmatpush1.msra.mxu0 0.0
      %363 = vmatprep.mubr.f32.mxu0 0.0
      %364 = vmatmul.mubr.f32.gmra.mrb[0].mxu0 %v271
      %v365 = vpop.f32.mrb[0].mxu0
      %v366 = vadd.f32 %v230, %v365
      %v367 = vpop.f32.mrb[0].mxu0
      %v368 = vadd.f32 %v230, %v367
      %369 = vmatprep.mubr.f32.mxu0 0.0
      %370 = vmatmul.mubr.f32.gmra.mrb[0].mxu0 %v274
      %v371 = vpop.f32.mrb[0].mxu0
      %v372 = vadd.f32 %v235, %v371
      %v373 = vpop.f32.mrb[0].mxu0
      %v374 = vadd.f32 %v235, %v373
      %375 = vmatprep.mubr.f32.mxu0 0.0
      %376 = vmatmul.mubr.f32.gmra.mrb[0].mxu0 %v277
      %v377 = vpop.f32.mrb[0].mxu0
      %v378 = vadd.f32 %v240, %v377
      %v379 = vpop.f32.mrb[0].mxu0
      %v380 = vadd.f32 %v240, %v379
      %381 = vmatprep.mubr.f32.mxu0 0.0
      %382 = vmatmul.mubr.f32.gmra.mrb[0].mxu0 %v280
      %v383 = vpop.f32.mrb[0].mxu0
      %v384 = vadd.f32 %v245, %v383
      %v385 = vpop.f32.mrb[0].mxu0
      %v386 = vadd.f32 %v245, %v385
      %387 = vmatprep.mubr.f32.mxu0 0.0
      %388 = vmatmul.mubr.f32.gmra.mrb[0].mxu0 %v283
      %v389 = vpop.f32.mrb[0].mxu0
      %v390 = vadd.f32 %v250, %v389
      %v391 = vpop.f32.mrb[0].mxu0
      %v392 = vadd.f32 %v250, %v391
      %393 = vmatprep.mubr.f32.mxu0 0.0
      %394 = vmatmul.mubr.f32.gmra.mrb[0].mxu0 %v286
      %v395 = vpop.f32.mrb[0].mxu0
      %v396 = vadd.f32 %v255, %v395
      %v397 = vpop.f32.mrb[0].mxu0
      %v398 = vadd.f32 %v255, %v397
      %399 = vmatprep.mubr.f32.mxu0 0.0
      %400 = vmatmul.mubr.f32.gmra.mrb[0].mxu0 %v289
      %v401 = vpop.f32.mrb[0].mxu0
      %v402 = vadd.f32 %v260, %v401
      %v403 = vpop.f32.mrb[0].mxu0
      %v404 = vadd.f32 %v260, %v403
      %405 = vmatprep.mubr.f32.mxu0 0.0
      %406 = vmatmul.mubr.f32.gmra.mrb[0].mxu0 %v292
      %v407 = vpop.f32.mrb[0].mxu0
      %v408 = vadd.f32 %v265, %v407
      %v409 = vpop.f32.mrb[0].mxu0
      %v410 = vadd.f32 %v265, %v409
      %411 = vdwg.mxu0
      %v412 = vmax.f32 %v366, 0.0
      %v413 = vmax.f32 %v368, 0.0
      %v414 = vmax.f32 %v372, 0.0
      %v415 = vmax.f32 %v374, 0.0
      %v416 = vmax.f32 %v378, 0.0
      %v417 = vmax.f32 %v380, 0.0
      %v418 = vmax.f32 %v384, 0.0
      %v419 = vmax.f32 %v386, 0.0
      %v420 = vmax.f32 %v390, 0.0
      %v421 = vmax.f32 %v392, 0.0
      %v422 = vmax.f32 %v396, 0.0
      %v423 = vmax.f32 %v398, 0.0
      %v424 = vmax.f32 %v402, 0.0
      %v425 = vmax.f32 %v404, 0.0
      %v426 = vmax.f32 %v408, 0.0
      %v427 = vmax.f32 %v410, 0.0
      %v445 = vrot.slane %v412, 4
      %v446 = vrot.slane %v413, 4
      %v447 = vrot.slane %v414, 4
      %v448 = vsel %vm294, %v445, %v447
      %v449 = vrot.slane %v415, 4
      %v450 = vsel %vm294, %v446, %v449
      %v451 = vrot.slane %v416, 4
      %v452 = vsel %vm294, %v447, %v451
      %v453 = vrot.slane %v417, 4
      %v454 = vsel %vm294, %v449, %v453
      %v455 = vrot.slane %v418, 4
      %v456 = vsel %vm294, %v451, %v455
      %v457 = vrot.slane %v419, 4
      %v458 = vsel %vm294, %v453, %v457
      %v459 = vrot.slane %v420, 4
      %v460 = vsel %vm294, %v455, %v459
      %v461 = vrot.slane %v421, 4
      %v462 = vsel %vm294, %v457, %v461
      %v463 = vrot.slane %v422, 4
      %v464 = vsel %vm294, %v459, %v463
      %v465 = vrot.slane %v423, 4
      %v466 = vsel %vm294, %v461, %v465
      %v467 = vrot.slane %v424, 4
      %v468 = vsel %vm294, %v463, %v467
      %v469 = vrot.slane %v425, 4
      %v470 = vsel %vm294, %v465, %v469
      %v471 = vrot.slane %v426, 4
      %v472 = vsel %vm294, %v467, %v471
      %v473 = vrot.slane %v427, 4
      %v474 = vsel %vm294, %v469, %v473
      %v493 = vsel %vm294, %v210, %v445
      %v494 = vsel %vm294, %v268, %v446
      %495 = vst [vmem:[%s208] sm:$0xff] %v493
      %496 = vst [vmem:[%s208 + $0x8] sm:$0xff] %v494
      %497 = vst [vmem:[%s208 + $0x10] sm:$0xff] %v448
      %498 = vst [vmem:[%s208 + $0x18] sm:$0xff] %v450
      %499 = vst [vmem:[%s208 + $0x20] sm:$0xff] %v452
      %500 = vst [vmem:[%s208 + $0x28] sm:$0xff] %v454
      %501 = vst [vmem:[%s208 + $0x30] sm:$0xff] %v456
      %502 = vst [vmem:[%s208 + $0x38] sm:$0xff] %v458
      %503 = vst [vmem:[%s208 + $0x40] sm:$0xff] %v460
      %504 = vst [vmem:[%s208 + $0x48] sm:$0xff] %v462
      %505 = vst [vmem:[%s208 + $0x50] sm:$0xff] %v464
      %506 = vst [vmem:[%s208 + $0x58] sm:$0xff] %v466
      %507 = vst [vmem:[%s208 + $0x60] sm:$0xff] %v468
      %508 = vst [vmem:[%s208 + $0x68] sm:$0xff] %v470
      %509 = vst [vmem:[%s208 + $0x70] sm:$0xff] %v472
      %510 = vst [vmem:[%s208 + $0x78] sm:$0xff] %v474
      %511 = vst [vmem:[%s208 + $0x80] sm:$0xf] %v471
      %512 = vst [vmem:[%s208 + $0x88] sm:$0xf] %v473
      %s513 = smul.u32 2, %s19
      %p514 = scmp.lt.s32.totalorder %s18, 1
      %s515 = scalar_select %p514, %s18, 1
      %p516 = scmp.lt.s32.totalorder %s513, 1
      %s517 = scalar_select %p516, %s513, 1
      %s518 = smul.addr %s515, 18
      %s519 = sadd.s32 %s517, %s518
      %s520 = smul.addr %s519, 8
      %s521 = scalar_lea.vmem %s3, %s520
      // Predicated region
      $region33: #{dense_conv_forward.1} parent=31 // pred_check
        %p522 = pneg %p116
      $region34: #{dense_conv_forward.1} parent=31 // pred_check_branch
        %524 = sbr.rel (%p522) target = $region36
      $region35: #{dense_conv_forward.1} parent=31 // pred_region
        %s525 = smul.u32 2, %s19
      $region36: #{dense_conv_forward.1} parent=31 // pred_fallthru
        _
    $region32: #{dense_conv_forward.1} parent=5 // pred_fallthru
      _
    %p526 = scmp.le.s32.totalorder 2, %s9
    // Predicated region
    $region37: #{dense_conv_forward.1} parent=5 // pred_check
      %p527 = pneg %p526
    $region38: #{dense_conv_forward.1} parent=5 // pred_check_branch
      %529 = sbr.rel (%p527) target = $region40
    $region39: #{dense_conv_forward.1} parent=5 // pred_region
      %s530 = ssub.s32 %s9, 2
      // Predicated region
      $region41: #{dense_conv_forward.1} parent=39 // pred_check
        %p531 = pneg %p122
      $region42: #{dense_conv_forward.1} parent=39 // pred_check_branch
        %533 = sbr.rel (%p531) target = $region44
      $region43: #{dense_conv_forward.1} parent=39 // pred_region
        %s534 = smul.u32 2, %s21
        %p535 = scmp.lt.s32.totalorder %s20, 1
        %s536 = scalar_select %p535, %s20, 1
        %p537 = scmp.lt.s32.totalorder %s534, 1
        %s538 = scalar_select %p537, %s534, 1
        %s539 = smul.addr %s536, 18
        %s540 = sadd.s32 %s538, %s539
        %s541 = smul.addr %s540, 8
        %s542 = scalar_lea.vmem %s3, %s541
      $region44: #{dense_conv_forward.1} parent=39 // pred_fallthru
        _
    $region40: #{dense_conv_forward.1} parent=5 // pred_fallthru
      _
  $region6: #{dense_conv_forward.1} parent=0 // loop_footer
    %s13 = sadd.s32 1, %s9
  $region7: #{dense_conv_forward.1} parent=0 // loop_footer_branch
    %8 = sbr.rel target = $region3
  $region8: #{dense_conv_forward.1} parent=0 // loop_exit
    _

</llo_original>
